<compile_context>
chip_gen: v5e
topology: v5e:2x2
jax: 0.10.0
libtpu: 0.0.40
codegen_flags: <defaults>
</compile_context>

<pallas_src>
import numpy as np
import jax
import jax.numpy as jnp
from jax.experimental import pallas as pl


# ----------------------------------------------------------------------------
# Packed-weight layout shared by the host-side packer and the kernel
# ----------------------------------------------------------------------------
def _layout(num_filters, kernel_size, seq_len):
    assert kernel_size % 2 == 1, "PyTorch 'same'-length conv requires odd kernel_size"
    assert seq_len % 2 == 0, "MaxPool1d(2) assumes an even sequence length"
    F, K, L = num_filters, kernel_size, seq_len
    C1, C2, C3 = 2, 2 * F, 4 * F            # conv in/out channels (both branches)
    Lh = L // 2
    flat = C3 * Lh                           # == torch flatten size (2 * 2F * L/2)

    def up8(n):
        return (n + 7) // 8 * 8

    lay = dict(C1=C1, C2=C2, C3=C3, Lh=Lh, flat=flat)
    lay["R_W1H"] = 0                         # (flat, 64)   fc_turbidity_1 (permuted)
    lay["R_C1"] = flat                       # (K*C1, C2)   conv1 taps (block-diag)
    lay["R_C2"] = up8(lay["R_C1"] + K * C1)  # (K*C2, C3)   conv2 taps (block-diag)
    lay["R_W23"] = up8(lay["R_C2"] + K * C2)  # (64, 33)    [Wt2^T | Wn1[:, :64]^T]
    lay["R_B1H"] = lay["R_W23"] + 64         # (1, 64)      bt1
    lay["R_W3B"] = lay["R_B1H"] + 1          # (1, 32)      Wn1[:, 64]^T
    lay["R_W4"] = lay["R_B1H"] + 2           # (1, 32)      Wn2 row
    lay["R_BIAS"] = lay["R_B1H"] + 3         # (1, *)       remaining biases
    lay["ROWS"] = lay["R_BIAS"] + 1
    lay["LB_B3"] = C2 + C3                   # bias-row lane offsets
    lay["LB_B2H"] = C2 + C3 + 32
    lay["LB_B4H"] = C2 + C3 + 33
    lay["NL"] = max(64, C2 + C3 + 34)
    return lay


# ----------------------------------------------------------------------------
# Fused kernel: conv1 -> relu -> conv2 -> relu -> maxpool -> flatten -> heads
# ----------------------------------------------------------------------------
def _build_kernel(batch, seq_len, num_filters, kernel_size):
    B, L, F, K = batch, seq_len, num_filters, kernel_size
    lay = _layout(F, K, L)
    C1, C2, C3, Lh = lay["C1"], lay["C2"], lay["C3"], lay["Lh"]
    BL = B * L
    pad = K // 2
    f32 = jnp.float32

    def kernel(x_ref, w_ref, out_ref):
        def shift_rows(h, d, cols):
            # s[i] = h[i + d] for 0 <= i + d < BL, else 0 (global zero padding).
            if d == 0:
                return h
            z = jnp.zeros((abs(d), cols), f32)
            if d > 0:
                return jnp.concatenate([h[d:BL, :], z], axis=0)
            return jnp.concatenate([z, h[0:BL + d, :]], axis=0)

        def conv_relu(h, cin, cout, w_row0, bias):
            # K tap-accumulated matmuls on register values; the iota mask also
            # zeroes rows that would leak across the batch boundary.
            one = jax.lax.broadcasted_iota(jnp.int32, (L, cin), 0)
            pos = jnp.concatenate([one] * B, axis=0)            # in-batch position
            acc = None
            for t in range(K):
                d = t - pad
                ht = shift_rows(h, d, cin)
                if d > 0:
                    ht = jnp.where(pos < L - d, ht, 0.0)
                elif d < 0:
                    ht = jnp.where(pos >= -d, ht, 0.0)
                w_t = w_ref[w_row0 + cin * t: w_row0 + cin * (t + 1), 0:cout]
                term = jnp.dot(ht, w_t, preferred_element_type=f32)
                acc = term if acc is None else acc + term
            return jnp.maximum(acc + bias, 0.0)

        x = x_ref[...]                                           # (B*L, 2)
        b1 = w_ref[lay["R_BIAS"]:lay["R_BIAS"] + 1, 0:C2]
        b2 = w_ref[lay["R_BIAS"]:lay["R_BIAS"] + 1, C2:C2 + C3]
        h1 = conv_relu(x, C1, C2, lay["R_C1"], b1)               # (B*L, 2F)
        h2 = conv_relu(h1, C2, C3, lay["R_C2"], b2)              # (B*L, 4F)

        # MaxPool1d(2): even rows of hp hold max(h2[2l], h2[2l+1]); no stores.
        hp = jnp.maximum(h2, shift_rows(h2, 1, C3))              # (B*L, 4F)

        # fc_turbidity_1 with flatten folded into per-position (C3, 64) weight
        # blocks, accumulated over the Lh pooled positions (all in vregs).
        th = None
        for l in range(Lh):
            p_l = jnp.concatenate(
                [hp[b * L + 2 * l: b * L + 2 * l + 1, :] for b in range(B)],
                axis=0)                                          # (B, C3)
            w_l = w_ref[lay["R_W1H"] + C3 * l: lay["R_W1H"] + C3 * (l + 1), 0:64]
            term = jnp.dot(p_l, w_l, preferred_element_type=f32)
            th = term if th is None else th + term
        b1h = w_ref[lay["R_B1H"]:lay["R_B1H"] + 1, 0:64]
        th = jnp.maximum(th + b1h, 0.0)                          # (B, 64)

        # Fused turbidity output + nitrate-hidden partial: one (B,64)@(64,33).
        w23 = w_ref[lay["R_W23"]:lay["R_W23"] + 64, 0:33]
        h23 = jnp.dot(th, w23, preferred_element_type=f32)       # (B, 33)
        b2h = w_ref[lay["R_BIAS"]:lay["R_BIAS"] + 1,
                    lay["LB_B2H"]:lay["LB_B2H"] + 1]
        tp_ = h23[:, 0:1] + b2h                                  # turbidity (B, 1)

        w3b = w_ref[lay["R_W3B"]:lay["R_W3B"] + 1, 0:32]
        b3h = w_ref[lay["R_BIAS"]:lay["R_BIAS"] + 1,
                    lay["LB_B3"]:lay["LB_B3"] + 32]
        nh = jnp.maximum(h23[:, 1:33] + tp_ * w3b + b3h, 0.0)    # (B, 32)

        w4r = w_ref[lay["R_W4"]:lay["R_W4"] + 1, 0:32]
        b4h = w_ref[lay["R_BIAS"]:lay["R_BIAS"] + 1,
                    lay["LB_B4H"]:lay["LB_B4H"] + 1]
        nit = jnp.sum(nh * w4r, axis=1, keepdims=True) + b4h     # nitrate (B, 1)

        out_ref[...] = jnp.concatenate([nit, tp_], axis=1)       # (B, 2)

    return kernel


def make_forward(num_filters, kernel_size, batch, seq_len):
    B, L = batch, seq_len
    kernel = _build_kernel(B, L, num_filters, kernel_size)

    @jax.jit
    def forward(x, w_packed):
        # (B, 2, L) -> (B*L, 2): positions on sublanes (batch blocks stacked),
        # [wavelength, absorbance] on lanes.
        x2 = jnp.transpose(x.astype(jnp.float32), (0, 2, 1)).reshape(B * L, 2)
        out = pl.pallas_call(
            kernel,
            out_shape=jax.ShapeDtypeStruct((B, 2), jnp.float32),
        )(x2, w_packed)
        return out[:, 0:1], out[:, 1:2]      # (nitrate_pred, turbidity_pred)

    return forward


# ----------------------------------------------------------------------------
# Pure-JAX reference (PyTorch semantics / layouts) for validation
# ----------------------------------------------------------------------------
def _conv1d_same_ref(x, w, b):
    # x: (B, Cin, L), w: (Cout, Cin, K) [torch], b: (Cout,)
    K = w.shape[-1]
    pad = K // 2
    L = x.shape[-1]
    xp = jnp.pad(x, ((0, 0), (0, 0), (pad, pad)))
    cols = jnp.stack([xp[:, :, t:t + L] for t in range(K)], axis=-1)
    return jnp.einsum("bclk,ock->bol", cols, w) + b[None, :, None]


def forward_ref(x, tp):
    relu = lambda a: jnp.maximum(a, 0.0)

    def branch(inp, w1, b1, w2, b2):
        h1 = relu(_conv1d_same_ref(inp, w1, b1))
        h2 = relu(_conv1d_same_ref(h1, w2, b2))
        B, C, L = h2.shape
        pooled = jnp.max(h2.reshape(B, C, L // 2, 2), axis=-1)
        return pooled.reshape(B, -1)

    ow = branch(x[:, 0:1, :], tp["w1_wav"], tp["b1_wav"], tp["w2_wav"], tp["b2_wav"])
    oa = branch(x[:, 1:2, :], tp["w1_abs"], tp["b1_abs"], tp["w2_abs"], tp["b2_abs"])
    comb = jnp.concatenate([ow, oa], axis=1)
    th = relu(comb @ tp["Wt1"].T + tp["bt1"])
    t_pred = th @ tp["Wt2"].T + tp["bt2"]
    ni = jnp.concatenate([th, t_pred], axis=1)
    nh = relu(ni @ tp["Wn1"].T + tp["bn1"])
    n_pred = nh @ tp["Wn2"].T + tp["bn2"]
    return n_pred, t_pred


# ----------------------------------------------------------------------------
# Parameter construction: torch-layout params + single packed kernel operand
# ----------------------------------------------------------------------------
def make_params(key, num_filters, kernel_size, seq_len):
    F, K, L = num_filters, kernel_size, seq_len
    F2, Lh = 2 * F, L // 2
    flat = 2 * F2 * Lh
    ks = jax.random.split(key, 16)
    r = lambda k, shp, s=0.2: (s * jax.random.normal(k, shp)).astype(jnp.float32)

    # torch-layout parameters (deterministic, synthetic; lazy Linear sizes are
    # known statically so the head weights are created up-front).
    tp = {
        "w1_wav": r(ks[0], (F, 1, K)), "b1_wav": r(ks[1], (F,)),
        "w2_wav": r(ks[2], (F2, F, K)), "b2_wav": r(ks[3], (F2,)),
        "w1_abs": r(ks[4], (F, 1, K)), "b1_abs": r(ks[5], (F,)),
        "w2_abs": r(ks[6], (F2, F, K)), "b2_abs": r(ks[7], (F2,)),
        "Wt1": r(ks[8], (64, flat)), "bt1": r(ks[9], (64,)),
        "Wt2": r(ks[10], (1, 64)), "bt2": r(ks[11], (1,)),
        "Wn1": r(ks[12], (32, 65)), "bn1": r(ks[13], (32,)),
        "Wn2": r(ks[14], (1, 32)), "bn2": r(ks[15], (1,)),
    }

    lay = _layout(F, K, L)
    C1, C2, C3 = lay["C1"], lay["C2"], lay["C3"]
    W = np.zeros((lay["ROWS"], lay["NL"]), np.float32)

    # fc_turbidity_1 with the channel-major flatten permutation folded in:
    # kernel index i = l*C3 + branch*F2 + ch  <->  torch index branch*F2*Lh + ch*Lh + l
    perm = np.empty(flat, np.int64)
    i = 0
    for l in range(Lh):
        for br in range(2):
            for ch in range(F2):
                perm[i] = br * F2 * Lh + ch * Lh + l
                i += 1
    W[lay["R_W1H"]:lay["R_W1H"] + flat, 0:64] = np.asarray(tp["Wt1"]).T[perm, :]

    # conv1 taps, block-diagonal over the two branches: rows = [wav_in, abs_in]
    w1w, w1a = np.asarray(tp["w1_wav"]), np.asarray(tp["w1_abs"])
    for t in range(K):
        r0 = lay["R_C1"] + C1 * t
        W[r0 + 0, 0:F] = w1w[:, 0, t]
        W[r0 + 1, F:F2] = w1a[:, 0, t]

    # conv2 taps, block-diagonal: rows 0..F-1 = wav in-channels, F..2F-1 = abs.
    w2w, w2a = np.asarray(tp["w2_wav"]), np.asarray(tp["w2_abs"])
    for t in range(K):
        r0 = lay["R_C2"] + C2 * t
        for c in range(F):
            W[r0 + c, 0:F2] = w2w[:, c, t]
            W[r0 + F + c, F2:2 * F2] = w2a[:, c, t]

    # fused head-2: [Wt2^T | Wn1[:, :64]^T]  (64, 33)
    W[lay["R_W23"]:lay["R_W23"] + 64, 0:1] = np.asarray(tp["Wt2"]).T
    W[lay["R_W23"]:lay["R_W23"] + 64, 1:33] = np.asarray(tp["Wn1"]).T[:64, :]

    W[lay["R_B1H"], 0:64] = np.asarray(tp["bt1"])
    W[lay["R_W3B"], 0:32] = np.asarray(tp["Wn1"])[:, 64]         # turbidity column
    W[lay["R_W4"], 0:32] = np.asarray(tp["Wn2"])[0, :]

    W[lay["R_BIAS"], 0:C2] = np.concatenate(
        [np.asarray(tp["b1_wav"]), np.asarray(tp["b1_abs"])])
    W[lay["R_BIAS"], C2:C2 + C3] = np.concatenate(
        [np.asarray(tp["b2_wav"]), np.asarray(tp["b2_abs"])])
    W[lay["R_BIAS"], lay["LB_B3"]:lay["LB_B3"] + 32] = np.asarray(tp["bn1"])
    W[lay["R_BIAS"], lay["LB_B2H"]] = float(np.asarray(tp["bt2"])[0])
    W[lay["R_BIAS"], lay["LB_B4H"]] = float(np.asarray(tp["bn2"])[0])

    return tp, jnp.asarray(W)


if __name__ == "__main__":
    B, L, NUM_FILTERS, KERNEL_SIZE = 2, 16, 4, 3

    key = jax.random.PRNGKey(0)
    k_params, k_x = jax.random.split(key)
    torch_params, w_packed = make_params(k_params, NUM_FILTERS, KERNEL_SIZE, L)
    x = jax.random.normal(k_x, (B, 2, L), dtype=jnp.float32)

    fwd = make_forward(NUM_FILTERS, KERNEL_SIZE, B, L)
    nit, turb = fwd(x, w_packed)
    jax.block_until_ready((nit, turb))

    nit_ref, turb_ref = forward_ref(x, torch_params)
    assert nit.shape == (B, 1) and turb.shape == (B, 1)
    assert jnp.allclose(nit, nit_ref, atol=1e-3, rtol=1e-3)
    assert jnp.allclose(turb, turb_ref, atol=1e-3, rtol=1e-3)

    print("KERNEL_OK")
</pallas_src>

<mosaic_0001>
module attributes {stable_mosaic.version = 11 : i64} {
  func.func @kernel(%arg0: memref<32x2xf32, #tpu.memory_space<vmem>>, %arg1: memref<228x64xf32, #tpu.memory_space<vmem>>, %arg2: memref<2x2xf32, #tpu.memory_space<vmem>>) attributes {dimension_semantics = [], scalar_prefetch = 0 : i64, scratch_operands = 0 : i64, tpu.core_type = #tpu.core_type<tc>} {
    %c0 = arith.constant 0 : index
    %c0_0 = arith.constant 0 : index
    %0 = vector.load %arg0[%c0, %c0_0] : memref<32x2xf32, #tpu.memory_space<vmem>>, vector<32x2xf32>
    %c227 = arith.constant 227 : index
    %c0_1 = arith.constant 0 : index
    %1 = vector.load %arg1[%c227, %c0_1] : memref<228x64xf32, #tpu.memory_space<vmem>>, vector<1x8xf32>
    %c227_2 = arith.constant 227 : index
    %c8 = arith.constant 8 : index
    %2 = vector.load %arg1[%c227_2, %c8] : memref<228x64xf32, #tpu.memory_space<vmem>>, vector<1x16xf32>
    %3 = tpu.iota {dimensions = array<i32: 0>} : vector<16x2xi32>
    %4 = tpu.concatenate %3, %3 in 0 : vector<16x2xi32>, vector<16x2xi32> -> vector<32x2xi32>
    %cst = arith.constant 0.000000e+00 : f32
    %5 = vector.broadcast %cst : f32 to vector<1x2xf32>
    %6 = vector.extract_strided_slice %0 {offsets = [0, 0], sizes = [31, 2], strides = [1, 1]} : vector<32x2xf32> to vector<31x2xf32>
    %7 = tpu.concatenate %5, %6 in 0 : vector<1x2xf32>, vector<31x2xf32> -> vector<32x2xf32>
    %c1_i32 = arith.constant 1 : i32
    %8 = vector.broadcast %c1_i32 : i32 to vector<32x2xi32>
    %9 = arith.cmpi sge, %4, %8 : vector<32x2xi32>
    %cst_3 = arith.constant 0.000000e+00 : f32
    %10 = vector.broadcast %cst_3 : f32 to vector<32x2xf32>
    %11 = arith.select %9, %7, %10 : vector<32x2xi1>, vector<32x2xf32>
    %c128 = arith.constant 128 : index
    %c0_4 = arith.constant 0 : index
    %12 = vector.load %arg1[%c128, %c0_4] : memref<228x64xf32, #tpu.memory_space<vmem>>, vector<2x8xf32>
    %cst_5 = arith.constant dense<0.000000e+00> : vector<32x8xf32>
    %13 = tpu.matmul %11, %12, %cst_5 {dimension_numbers = #tpu.dot_dimension_numbers<[1], [0], [0], [1], [0, 0, 1, 1], [], []>} : vector<32x2xf32>, vector<2x8xf32>, vector<32x8xf32> -> vector<32x8xf32>
    %c130 = arith.constant 130 : index
    %c0_6 = arith.constant 0 : index
    %14 = vector.load %arg1[%c130, %c0_6] : memref<228x64xf32, #tpu.memory_space<vmem>>, vector<2x8xf32>
    %cst_7 = arith.constant dense<0.000000e+00> : vector<32x8xf32>
    %15 = tpu.matmul %0, %14, %cst_7 {dimension_numbers = #tpu.dot_dimension_numbers<[1], [0], [0], [1], [0, 0, 1, 1], [], []>} : vector<32x2xf32>, vector<2x8xf32>, vector<32x8xf32> -> vector<32x8xf32>
    %16 = arith.addf %13, %15 : vector<32x8xf32>
    %cst_8 = arith.constant 0.000000e+00 : f32
    %17 = vector.broadcast %cst_8 : f32 to vector<1x2xf32>
    %18 = vector.extract_strided_slice %0 {offsets = [1, 0], sizes = [31, 2], strides = [1, 1]} : vector<32x2xf32> to vector<31x2xf32>
    %19 = tpu.concatenate %18, %17 in 0 : vector<31x2xf32>, vector<1x2xf32> -> vector<32x2xf32>
    %c15_i32 = arith.constant 15 : i32
    %20 = vector.broadcast %c15_i32 : i32 to vector<32x2xi32>
    %21 = arith.cmpi slt, %4, %20 : vector<32x2xi32>
    %cst_9 = arith.constant 0.000000e+00 : f32
    %22 = vector.broadcast %cst_9 : f32 to vector<32x2xf32>
    %23 = arith.select %21, %19, %22 : vector<32x2xi1>, vector<32x2xf32>
    %c132 = arith.constant 132 : index
    %c0_10 = arith.constant 0 : index
    %24 = vector.load %arg1[%c132, %c0_10] : memref<228x64xf32, #tpu.memory_space<vmem>>, vector<2x8xf32>
    %cst_11 = arith.constant dense<0.000000e+00> : vector<32x8xf32>
    %25 = tpu.matmul %23, %24, %cst_11 {dimension_numbers = #tpu.dot_dimension_numbers<[1], [0], [0], [1], [0, 0, 1, 1], [], []>} : vector<32x2xf32>, vector<2x8xf32>, vector<32x8xf32> -> vector<32x8xf32>
    %26 = arith.addf %16, %25 : vector<32x8xf32>
    %27 = vector.broadcast %1 : vector<1x8xf32> to vector<32x8xf32>
    %28 = arith.addf %26, %27 : vector<32x8xf32>
    %cst_12 = arith.constant 0.000000e+00 : f32
    %29 = vector.broadcast %cst_12 : f32 to vector<32x8xf32>
    %30 = arith.maximumf %28, %29 : vector<32x8xf32>
    %31 = tpu.iota {dimensions = array<i32: 0>} : vector<16x8xi32>
    %32 = tpu.concatenate %31, %31 in 0 : vector<16x8xi32>, vector<16x8xi32> -> vector<32x8xi32>
    %cst_13 = arith.constant 0.000000e+00 : f32
    %33 = vector.broadcast %cst_13 : f32 to vector<1x8xf32>
    %34 = vector.extract_strided_slice %30 {offsets = [0, 0], sizes = [31, 8], strides = [1, 1]} : vector<32x8xf32> to vector<31x8xf32>
    %35 = tpu.concatenate %33, %34 in 0 : vector<1x8xf32>, vector<31x8xf32> -> vector<32x8xf32>
    %c1_i32_14 = arith.constant 1 : i32
    %36 = vector.broadcast %c1_i32_14 : i32 to vector<32x8xi32>
    %37 = arith.cmpi sge, %32, %36 : vector<32x8xi32>
    %cst_15 = arith.constant 0.000000e+00 : f32
    %38 = vector.broadcast %cst_15 : f32 to vector<32x8xf32>
    %39 = arith.select %37, %35, %38 : vector<32x8xi1>, vector<32x8xf32>
    %c136 = arith.constant 136 : index
    %c0_16 = arith.constant 0 : index
    %40 = vector.load %arg1[%c136, %c0_16] : memref<228x64xf32, #tpu.memory_space<vmem>>, vector<8x16xf32>
    %cst_17 = arith.constant dense<0.000000e+00> : vector<32x16xf32>
    %41 = tpu.matmul %39, %40, %cst_17 {dimension_numbers = #tpu.dot_dimension_numbers<[1], [0], [0], [1], [0, 0, 1, 1], [], []>} : vector<32x8xf32>, vector<8x16xf32>, vector<32x16xf32> -> vector<32x16xf32>
    %c144 = arith.constant 144 : index
    %c0_18 = arith.constant 0 : index
    %42 = vector.load %arg1[%c144, %c0_18] : memref<228x64xf32, #tpu.memory_space<vmem>>, vector<8x16xf32>
    %cst_19 = arith.constant dense<0.000000e+00> : vector<32x16xf32>
    %43 = tpu.matmul %30, %42, %cst_19 {dimension_numbers = #tpu.dot_dimension_numbers<[1], [0], [0], [1], [0, 0, 1, 1], [], []>} : vector<32x8xf32>, vector<8x16xf32>, vector<32x16xf32> -> vector<32x16xf32>
    %44 = arith.addf %41, %43 : vector<32x16xf32>
    %cst_20 = arith.constant 0.000000e+00 : f32
    %45 = vector.broadcast %cst_20 : f32 to vector<1x8xf32>
    %46 = vector.extract_strided_slice %30 {offsets = [1, 0], sizes = [31, 8], strides = [1, 1]} : vector<32x8xf32> to vector<31x8xf32>
    %47 = tpu.concatenate %46, %45 in 0 : vector<31x8xf32>, vector<1x8xf32> -> vector<32x8xf32>
    %c15_i32_21 = arith.constant 15 : i32
    %48 = vector.broadcast %c15_i32_21 : i32 to vector<32x8xi32>
    %49 = arith.cmpi slt, %32, %48 : vector<32x8xi32>
    %cst_22 = arith.constant 0.000000e+00 : f32
    %50 = vector.broadcast %cst_22 : f32 to vector<32x8xf32>
    %51 = arith.select %49, %47, %50 : vector<32x8xi1>, vector<32x8xf32>
    %c152 = arith.constant 152 : index
    %c0_23 = arith.constant 0 : index
    %52 = vector.load %arg1[%c152, %c0_23] : memref<228x64xf32, #tpu.memory_space<vmem>>, vector<8x16xf32>
    %cst_24 = arith.constant dense<0.000000e+00> : vector<32x16xf32>
    %53 = tpu.matmul %51, %52, %cst_24 {dimension_numbers = #tpu.dot_dimension_numbers<[1], [0], [0], [1], [0, 0, 1, 1], [], []>} : vector<32x8xf32>, vector<8x16xf32>, vector<32x16xf32> -> vector<32x16xf32>
    %54 = arith.addf %44, %53 : vector<32x16xf32>
    %55 = vector.broadcast %2 : vector<1x16xf32> to vector<32x16xf32>
    %56 = arith.addf %54, %55 : vector<32x16xf32>
    %cst_25 = arith.constant 0.000000e+00 : f32
    %57 = vector.broadcast %cst_25 : f32 to vector<32x16xf32>
    %58 = arith.maximumf %56, %57 : vector<32x16xf32>
    %cst_26 = arith.constant 0.000000e+00 : f32
    %59 = vector.broadcast %cst_26 : f32 to vector<1x16xf32>
    %60 = vector.extract_strided_slice %58 {offsets = [1, 0], sizes = [31, 16], strides = [1, 1]} : vector<32x16xf32> to vector<31x16xf32>
    %61 = tpu.concatenate %60, %59 in 0 : vector<31x16xf32>, vector<1x16xf32> -> vector<32x16xf32>
    %62 = arith.maximumf %58, %61 : vector<32x16xf32>
    %63 = vector.extract_strided_slice %62 {offsets = [0, 0], sizes = [1, 16], strides = [1, 1]} : vector<32x16xf32> to vector<1x16xf32>
    %64 = vector.extract_strided_slice %62 {offsets = [16, 0], sizes = [1, 16], strides = [1, 1]} : vector<32x16xf32> to vector<1x16xf32>
    %65 = tpu.concatenate %63, %64 in 0 : vector<1x16xf32>, vector<1x16xf32> -> vector<2x16xf32>
    %c0_27 = arith.constant 0 : index
    %c0_28 = arith.constant 0 : index
    %66 = vector.load %arg1[%c0_27, %c0_28] : memref<228x64xf32, #tpu.memory_space<vmem>>, vector<16x64xf32>
    %cst_29 = arith.constant dense<0.000000e+00> : vector<2x64xf32>
    %67 = tpu.matmul %65, %66, %cst_29 {dimension_numbers = #tpu.dot_dimension_numbers<[1], [0], [0], [1], [0, 0, 1, 1], [], []>} : vector<2x16xf32>, vector<16x64xf32>, vector<2x64xf32> -> vector<2x64xf32>
    %68 = vector.extract_strided_slice %62 {offsets = [2, 0], sizes = [1, 16], strides = [1, 1]} : vector<32x16xf32> to vector<1x16xf32>
    %69 = vector.extract_strided_slice %62 {offsets = [18, 0], sizes = [1, 16], strides = [1, 1]} : vector<32x16xf32> to vector<1x16xf32>
    %70 = tpu.concatenate %68, %69 in 0 : vector<1x16xf32>, vector<1x16xf32> -> vector<2x16xf32>
    %c16 = arith.constant 16 : index
    %c0_30 = arith.constant 0 : index
    %71 = vector.load %arg1[%c16, %c0_30] : memref<228x64xf32, #tpu.memory_space<vmem>>, vector<16x64xf32>
    %cst_31 = arith.constant dense<0.000000e+00> : vector<2x64xf32>
    %72 = tpu.matmul %70, %71, %cst_31 {dimension_numbers = #tpu.dot_dimension_numbers<[1], [0], [0], [1], [0, 0, 1, 1], [], []>} : vector<2x16xf32>, vector<16x64xf32>, vector<2x64xf32> -> vector<2x64xf32>
    %73 = arith.addf %67, %72 : vector<2x64xf32>
    %74 = vector.extract_strided_slice %62 {offsets = [4, 0], sizes = [1, 16], strides = [1, 1]} : vector<32x16xf32> to vector<1x16xf32>
    %75 = vector.extract_strided_slice %62 {offsets = [20, 0], sizes = [1, 16], strides = [1, 1]} : vector<32x16xf32> to vector<1x16xf32>
    %76 = tpu.concatenate %74, %75 in 0 : vector<1x16xf32>, vector<1x16xf32> -> vector<2x16xf32>
    %c32 = arith.constant 32 : index
    %c0_32 = arith.constant 0 : index
    %77 = vector.load %arg1[%c32, %c0_32] : memref<228x64xf32, #tpu.memory_space<vmem>>, vector<16x64xf32>
    %cst_33 = arith.constant dense<0.000000e+00> : vector<2x64xf32>
    %78 = tpu.matmul %76, %77, %cst_33 {dimension_numbers = #tpu.dot_dimension_numbers<[1], [0], [0], [1], [0, 0, 1, 1], [], []>} : vector<2x16xf32>, vector<16x64xf32>, vector<2x64xf32> -> vector<2x64xf32>
    %79 = arith.addf %73, %78 : vector<2x64xf32>
    %80 = vector.extract_strided_slice %62 {offsets = [6, 0], sizes = [1, 16], strides = [1, 1]} : vector<32x16xf32> to vector<1x16xf32>
    %81 = vector.extract_strided_slice %62 {offsets = [22, 0], sizes = [1, 16], strides = [1, 1]} : vector<32x16xf32> to vector<1x16xf32>
    %82 = tpu.concatenate %80, %81 in 0 : vector<1x16xf32>, vector<1x16xf32> -> vector<2x16xf32>
    %c48 = arith.constant 48 : index
    %c0_34 = arith.constant 0 : index
    %83 = vector.load %arg1[%c48, %c0_34] : memref<228x64xf32, #tpu.memory_space<vmem>>, vector<16x64xf32>
    %cst_35 = arith.constant dense<0.000000e+00> : vector<2x64xf32>
    %84 = tpu.matmul %82, %83, %cst_35 {dimension_numbers = #tpu.dot_dimension_numbers<[1], [0], [0], [1], [0, 0, 1, 1], [], []>} : vector<2x16xf32>, vector<16x64xf32>, vector<2x64xf32> -> vector<2x64xf32>
    %85 = arith.addf %79, %84 : vector<2x64xf32>
    %86 = vector.extract_strided_slice %62 {offsets = [8, 0], sizes = [1, 16], strides = [1, 1]} : vector<32x16xf32> to vector<1x16xf32>
    %87 = vector.extract_strided_slice %62 {offsets = [24, 0], sizes = [1, 16], strides = [1, 1]} : vector<32x16xf32> to vector<1x16xf32>
    %88 = tpu.concatenate %86, %87 in 0 : vector<1x16xf32>, vector<1x16xf32> -> vector<2x16xf32>
    %c64 = arith.constant 64 : index
    %c0_36 = arith.constant 0 : index
    %89 = vector.load %arg1[%c64, %c0_36] : memref<228x64xf32, #tpu.memory_space<vmem>>, vector<16x64xf32>
    %cst_37 = arith.constant dense<0.000000e+00> : vector<2x64xf32>
    %90 = tpu.matmul %88, %89, %cst_37 {dimension_numbers = #tpu.dot_dimension_numbers<[1], [0], [0], [1], [0, 0, 1, 1], [], []>} : vector<2x16xf32>, vector<16x64xf32>, vector<2x64xf32> -> vector<2x64xf32>
    %91 = arith.addf %85, %90 : vector<2x64xf32>
    %92 = vector.extract_strided_slice %62 {offsets = [10, 0], sizes = [1, 16], strides = [1, 1]} : vector<32x16xf32> to vector<1x16xf32>
    %93 = vector.extract_strided_slice %62 {offsets = [26, 0], sizes = [1, 16], strides = [1, 1]} : vector<32x16xf32> to vector<1x16xf32>
    %94 = tpu.concatenate %92, %93 in 0 : vector<1x16xf32>, vector<1x16xf32> -> vector<2x16xf32>
    %c80 = arith.constant 80 : index
    %c0_38 = arith.constant 0 : index
    %95 = vector.load %arg1[%c80, %c0_38] : memref<228x64xf32, #tpu.memory_space<vmem>>, vector<16x64xf32>
    %cst_39 = arith.constant dense<0.000000e+00> : vector<2x64xf32>
    %96 = tpu.matmul %94, %95, %cst_39 {dimension_numbers = #tpu.dot_dimension_numbers<[1], [0], [0], [1], [0, 0, 1, 1], [], []>} : vector<2x16xf32>, vector<16x64xf32>, vector<2x64xf32> -> vector<2x64xf32>
    %97 = arith.addf %91, %96 : vector<2x64xf32>
    %98 = vector.extract_strided_slice %62 {offsets = [12, 0], sizes = [1, 16], strides = [1, 1]} : vector<32x16xf32> to vector<1x16xf32>
    %99 = vector.extract_strided_slice %62 {offsets = [28, 0], sizes = [1, 16], strides = [1, 1]} : vector<32x16xf32> to vector<1x16xf32>
    %100 = tpu.concatenate %98, %99 in 0 : vector<1x16xf32>, vector<1x16xf32> -> vector<2x16xf32>
    %c96 = arith.constant 96 : index
    %c0_40 = arith.constant 0 : index
    %101 = vector.load %arg1[%c96, %c0_40] : memref<228x64xf32, #tpu.memory_space<vmem>>, vector<16x64xf32>
    %cst_41 = arith.constant dense<0.000000e+00> : vector<2x64xf32>
    %102 = tpu.matmul %100, %101, %cst_41 {dimension_numbers = #tpu.dot_dimension_numbers<[1], [0], [0], [1], [0, 0, 1, 1], [], []>} : vector<2x16xf32>, vector<16x64xf32>, vector<2x64xf32> -> vector<2x64xf32>
    %103 = arith.addf %97, %102 : vector<2x64xf32>
    %104 = vector.extract_strided_slice %62 {offsets = [14, 0], sizes = [1, 16], strides = [1, 1]} : vector<32x16xf32> to vector<1x16xf32>
    %105 = vector.extract_strided_slice %62 {offsets = [30, 0], sizes = [1, 16], strides = [1, 1]} : vector<32x16xf32> to vector<1x16xf32>
    %106 = tpu.concatenate %104, %105 in 0 : vector<1x16xf32>, vector<1x16xf32> -> vector<2x16xf32>
    %c112 = arith.constant 112 : index
    %c0_42 = arith.constant 0 : index
    %107 = vector.load %arg1[%c112, %c0_42] : memref<228x64xf32, #tpu.memory_space<vmem>>, vector<16x64xf32>
    %cst_43 = arith.constant dense<0.000000e+00> : vector<2x64xf32>
    %108 = tpu.matmul %106, %107, %cst_43 {dimension_numbers = #tpu.dot_dimension_numbers<[1], [0], [0], [1], [0, 0, 1, 1], [], []>} : vector<2x16xf32>, vector<16x64xf32>, vector<2x64xf32> -> vector<2x64xf32>
    %109 = arith.addf %103, %108 : vector<2x64xf32>
    %c224 = arith.constant 224 : index
    %c0_44 = arith.constant 0 : index
    %110 = vector.load %arg1[%c224, %c0_44] : memref<228x64xf32, #tpu.memory_space<vmem>>, vector<1x64xf32>
    %111 = vector.broadcast %110 : vector<1x64xf32> to vector<2x64xf32>
    %112 = arith.addf %109, %111 : vector<2x64xf32>
    %cst_45 = arith.constant 0.000000e+00 : f32
    %113 = vector.broadcast %cst_45 : f32 to vector<2x64xf32>
    %114 = arith.maximumf %112, %113 : vector<2x64xf32>
    %c160 = arith.constant 160 : index
    %c0_46 = arith.constant 0 : index
    %115 = vector.load %arg1[%c160, %c0_46] : memref<228x64xf32, #tpu.memory_space<vmem>>, vector<64x33xf32>
    %cst_47 = arith.constant dense<0.000000e+00> : vector<2x33xf32>
    %116 = tpu.matmul %114, %115, %cst_47 {dimension_numbers = #tpu.dot_dimension_numbers<[1], [0], [0], [1], [0, 0, 1, 1], [], []>} : vector<2x64xf32>, vector<64x33xf32>, vector<2x33xf32> -> vector<2x33xf32>
    %c227_48 = arith.constant 227 : index
    %c56 = arith.constant 56 : index
    %117 = vector.load %arg1[%c227_48, %c56] : memref<228x64xf32, #tpu.memory_space<vmem>>, vector<1x1xf32>
    %118 = vector.extract_strided_slice %116 {offsets = [0, 0], sizes = [2, 1], strides = [1, 1]} : vector<2x33xf32> to vector<2x1xf32>
    %119 = vector.broadcast %117 : vector<1x1xf32> to vector<2x1xf32>
    %120 = arith.addf %118, %119 : vector<2x1xf32>
    %c225 = arith.constant 225 : index
    %c0_49 = arith.constant 0 : index
    %121 = vector.load %arg1[%c225, %c0_49] : memref<228x64xf32, #tpu.memory_space<vmem>>, vector<1x32xf32>
    %c227_50 = arith.constant 227 : index
    %c24 = arith.constant 24 : index
    %122 = vector.load %arg1[%c227_50, %c24] : memref<228x64xf32, #tpu.memory_space<vmem>>, vector<1x32xf32>
    %123 = vector.extract_strided_slice %116 {offsets = [0, 1], sizes = [2, 32], strides = [1, 1]} : vector<2x33xf32> to vector<2x32xf32>
    %124 = vector.broadcast %120 : vector<2x1xf32> to vector<2x32xf32>
    %125 = vector.broadcast %121 : vector<1x32xf32> to vector<2x32xf32>
    %126 = arith.mulf %124, %125 : vector<2x32xf32>
    %127 = arith.addf %123, %126 : vector<2x32xf32>
    %128 = vector.broadcast %122 : vector<1x32xf32> to vector<2x32xf32>
    %129 = arith.addf %127, %128 : vector<2x32xf32>
    %cst_51 = arith.constant 0.000000e+00 : f32
    %130 = vector.broadcast %cst_51 : f32 to vector<2x32xf32>
    %131 = arith.maximumf %129, %130 : vector<2x32xf32>
    %c226 = arith.constant 226 : index
    %c0_52 = arith.constant 0 : index
    %132 = vector.load %arg1[%c226, %c0_52] : memref<228x64xf32, #tpu.memory_space<vmem>>, vector<1x32xf32>
    %c227_53 = arith.constant 227 : index
    %c57 = arith.constant 57 : index
    %133 = vector.load %arg1[%c227_53, %c57] : memref<228x64xf32, #tpu.memory_space<vmem>>, vector<1x1xf32>
    %134 = vector.broadcast %132 : vector<1x32xf32> to vector<2x32xf32>
    %135 = arith.mulf %131, %134 : vector<2x32xf32>
    %cst_54 = arith.constant dense<0.000000e+00> : vector<2xf32>
    %136 = vector.multi_reduction <add>, %135, %cst_54 [1] : vector<2x32xf32> to vector<2xf32>
    %137 = vector.shape_cast %136 : vector<2xf32> to vector<2x1xf32>
    %138 = vector.broadcast %133 : vector<1x1xf32> to vector<2x1xf32>
    %139 = arith.addf %137, %138 : vector<2x1xf32>
    %140 = tpu.concatenate %139, %120 in 1 : vector<2x1xf32>, vector<2x1xf32> -> vector<2x2xf32>
    %c0_55 = arith.constant 0 : index
    %c0_56 = arith.constant 0 : index
    %141 = vector.load %arg2[%c0_55, %c0_56] : memref<2x2xf32, #tpu.memory_space<vmem>>, vector<2x2xf32>
    tpu.vector_store %arg2[%c0_55, %c0_56], %140 {strides = array<i32>} : memref<2x2xf32, #tpu.memory_space<vmem>>, vector<2x2xf32>,
    return
  }
}

</mosaic_0001>

<llo_original>
// kernel: forward.1
$region0: #{forward.1}
  #allocation0 [shape = 'u32[]', space=smem, size = 0x4, offset = 0x4, fixed_abs, tag = 'smem constant byte address 0x4 - core index']
  #allocation1 [shape = 'u32[72,128]{1,0:T(1,128)}', space=vmem, size = 0x9000, scoped, tag = 'internal scratch']
  %s0 = inlined_call_operand.vmem [shape: f32[32,2], index: 0, kind: input, shape index: {}]
  %s1 = inlined_call_operand.vmem [shape: f32[228,64], index: 1, kind: input, shape index: {}]
  %s2 = inlined_call_operand.vmem [shape: f32[2,2], index: 2, kind: output, shape index: {}]
  %s3 = sld [smem:[#allocation0]]
  $region18: #{forward.1} parent=0
    _
  %s5 = ssub.s32 1, %s3
  %s6 = scalar_select 0, %s5, %s3
  // Predicated region
  $region2: #{forward.1} parent=0 // pred_check
    _
  $region3: #{forward.1} parent=0 // pred_check_branch
    %8 = sbr.rel (0) target = $region5
  $region4: #{forward.1} parent=0 // pred_region
    _
  $region5: #{forward.1} parent=0 // pred_fallthru
    _
  // Predicated region
  $region6: #{forward.1} parent=0 // pred_check
    _
  $region7: #{forward.1} parent=0 // pred_check_branch
    %10 = sbr.rel (0) target = $region9
  $region8: #{forward.1} parent=0 // pred_region
    _
  $region9: #{forward.1} parent=0 // pred_fallthru
    _
  %v11 = vld [vmem:[%s0] sm:$0xff]
  %v12 = vld [vmem:[%s0 + $0x8] sm:$0xff]
  %v13 = vld [vmem:[%s0 + $0x10] sm:$0xff]
  %v14 = vld [vmem:[%s0 + $0x18] sm:$0xff]
  %v15 = vld [vmem:[%s1 + $0xe3] sm:$0x1]
  %v16 = vlaneseq
  %v17 = vshrl.u32 %v16, 7
  %v18 = vadd.s32 %v17, 8
  %vm23 = vcmask 1040384
  %v24 = vrot.slane %v11, 7
  %v25 = vrot.slane %v12, 7
  %v26 = vsel %vm23, %v24, %v25
  %v27 = vrot.slane %v13, 7
  %v28 = vsel %vm23, %v25, %v27
  %v29 = vrot.slane %v14, 7
  %v30 = vsel %vm23, %v27, %v29
  %v35 = vsel %vm23, 0.0, %v24
  %vm36 = vcmp.ge.s32.totalorder %v17, 1
  %vm37 = vcmp.ge.s32.totalorder %v18, 1
  %v38 = vsel %vm36, %v35, 0.0
  %v39 = vsel %vm37, %v26, 0.0
  %v40 = vsel %vm36, %v28, 0.0
  %v41 = vsel %vm37, %v30, 0.0
  %v42 = vld [vmem:[%s1 + $0x80] sm:$0x3]
  %v43 = vld [vmem:[%s1 + $0x82] sm:$0x3]
  %vm44 = vcmask 15360
  %v45 = vsel %vm44, %v11, 0
  %v47 = vsel %vm44, %v12, 0
  %v49 = vsel %vm44, %v13, 0
  %v51 = vsel %vm44, %v14, 0
  %vm53 = vcmask 1041408
  %v55 = vsel %vm53, %v43, 0
  %57 = vmatpush.msra.mxu0 0.0
  %58 = vmatpush.msra.mxu0 0.0
  %59 = vmatpush.msra.mxu0 0.0
  %60 = vmatpush.msra.mxu0 0.0
  %61 = vmatpush.msra.mxu0 0.0
  %62 = vmatpush.msra.mxu0 0.0
  %63 = vmatpush.msra.mxu0 0.0
  %64 = vmatpush.msra.mxu0 0.0
  %65 = vmatpush.msra.mxu0 0.0
  %66 = vmatpush.msra.mxu0 0.0
  %67 = vmatpush.msra.mxu0 0.0
  %68 = vmatpush.msra.mxu0 0.0
  %69 = vmatpush.msra.mxu0 0.0
  %70 = vmatpush.msra.mxu0 0.0
  %71 = vmatpush.msra.mxu0 0.0
  %72 = vmatpush.msra.mxu0 %v55
  %73 = vmatmul.f32.gmra.mxu0 %v45
  %v74 = vpop.f32.mrf.mxu0
  %v75 = vadd.f32 0.0, %v74
  %76 = vmatmul.f32.gmra.mxu0 %v47
  %v77 = vpop.f32.mrf.mxu0
  %v78 = vadd.f32 0.0, %v77
  %79 = vmatmul.f32.gmra.mxu0 %v49
  %v80 = vpop.f32.mrf.mxu0
  %v81 = vadd.f32 0.0, %v80
  %82 = vmatmul.f32.gmra.mxu0 %v51
  %v83 = vpop.f32.mrf.mxu0
  %v84 = vadd.f32 0.0, %v83
  %85 = vdwg.mxu0
  %v87 = vsel %vm44, %v38, 0
  %v90 = vsel %vm44, %v39, 0
  %v93 = vsel %vm44, %v40, 0
  %v96 = vsel %vm44, %v41, 0
  %v99 = vsel %vm53, %v42, 0
  %101 = vmatpush.msra.mxu0 0.0
  %102 = vmatpush.msra.mxu0 0.0
  %103 = vmatpush.msra.mxu0 0.0
  %104 = vmatpush.msra.mxu0 0.0
  %105 = vmatpush.msra.mxu0 0.0
  %106 = vmatpush.msra.mxu0 0.0
  %107 = vmatpush.msra.mxu0 0.0
  %108 = vmatpush.msra.mxu0 0.0
  %109 = vmatpush.msra.mxu0 0.0
  %110 = vmatpush.msra.mxu0 0.0
  %111 = vmatpush.msra.mxu0 0.0
  %112 = vmatpush.msra.mxu0 0.0
  %113 = vmatpush.msra.mxu0 0.0
  %114 = vmatpush.msra.mxu0 0.0
  %115 = vmatpush.msra.mxu0 0.0
  %116 = vmatpush.msra.mxu0 %v99
  %117 = vmatmul.f32.gmra.mxu0 %v87
  %v118 = vpop.f32.mrf.mxu0
  %v119 = vadd.f32 %v75, %v118
  %120 = vmatmul.f32.gmra.mxu0 %v90
  %v121 = vpop.f32.mrf.mxu0
  %v122 = vadd.f32 %v78, %v121
  %123 = vmatmul.f32.gmra.mxu0 %v93
  %v124 = vpop.f32.mrf.mxu0
  %v125 = vadd.f32 %v81, %v124
  %126 = vmatmul.f32.gmra.mxu0 %v96
  %v127 = vpop.f32.mrf.mxu0
  %v128 = vadd.f32 %v84, %v127
  %129 = vdwg.mxu0
  %vm130 = vcmask 1046528
  %v131 = vrot.slane %v11, 1
  %v132 = vrot.slane %v12, 1
  %v133 = vsel %vm130, %v131, %v132
  %v134 = vrot.slane %v13, 1
  %v135 = vsel %vm130, %v132, %v134
  %v136 = vrot.slane %v14, 1
  %v137 = vsel %vm130, %v134, %v136
  %v142 = vsel %vm130, %v136, 0.0
  %vm143 = vcmp.lt.s32.totalorder %v17, 15
  %vm144 = vcmp.lt.s32.totalorder %v18, 15
  %v145 = vsel %vm143, %v133, 0.0
  %v146 = vsel %vm144, %v135, 0.0
  %v147 = vsel %vm143, %v137, 0.0
  %v148 = vsel %vm144, %v142, 0.0
  %v149 = vld [vmem:[%s1 + $0x84] sm:$0x3]
  %v151 = vsel %vm44, %v145, 0
  %v154 = vsel %vm44, %v146, 0
  %v157 = vsel %vm44, %v147, 0
  %v160 = vsel %vm44, %v148, 0
  %v163 = vsel %vm53, %v149, 0
  %165 = vmatpush.msra.mxu0 0.0
  %166 = vmatpush.msra.mxu0 0.0
  %167 = vmatpush.msra.mxu0 0.0
  %168 = vmatpush.msra.mxu0 0.0
  %169 = vmatpush.msra.mxu0 0.0
  %170 = vmatpush.msra.mxu0 0.0
  %171 = vmatpush.msra.mxu0 0.0
  %172 = vmatpush.msra.mxu0 0.0
  %173 = vmatpush.msra.mxu0 0.0
  %174 = vmatpush.msra.mxu0 0.0
  %175 = vmatpush.msra.mxu0 0.0
  %176 = vmatpush.msra.mxu0 0.0
  %177 = vmatpush.msra.mxu0 0.0
  %178 = vmatpush.msra.mxu0 0.0
  %179 = vmatpush.msra.mxu0 0.0
  %180 = vmatpush.msra.mxu0 %v163
  %181 = vmatmul.f32.gmra.mxu0 %v151
  %v182 = vpop.f32.mrf.mxu0
  %v183 = vadd.f32 0.0, %v182
  %184 = vmatmul.f32.gmra.mxu0 %v154
  %v185 = vpop.f32.mrf.mxu0
  %v186 = vadd.f32 0.0, %v185
  %187 = vmatmul.f32.gmra.mxu0 %v157
  %v188 = vpop.f32.mrf.mxu0
  %v189 = vadd.f32 0.0, %v188
  %190 = vmatmul.f32.gmra.mxu0 %v160
  %v191 = vpop.f32.mrf.mxu0
  %v192 = vadd.f32 0.0, %v191
  %193 = vdwg.mxu0
  %v194 = vadd.f32 %v119, %v183
  %v195 = vadd.f32 %v122, %v186
  %v196 = vadd.f32 %v125, %v189
  %v197 = vadd.f32 %v128, %v192
  %v198 = vperm.slane %v15, 0
  %v199 = vadd.f32 %v194, %v198
  %v200 = vadd.f32 %v195, %v198
  %v201 = vadd.f32 %v196, %v198
  %v202 = vadd.f32 %v197, %v198
  %v203 = vmax.f32 %v199, 0.0
  %v204 = vmax.f32 %v200, 0.0
  %v205 = vmax.f32 %v201, 0.0
  %v206 = vmax.f32 %v202, 0.0
  %v211 = vrot.slane %v203, 7
  %v212 = vrot.slane %v204, 7
  %v213 = vsel %vm23, %v211, %v212
  %v214 = vrot.slane %v205, 7
  %v215 = vsel %vm23, %v212, %v214
  %v216 = vrot.slane %v206, 7
  %v217 = vsel %vm23, %v214, %v216
  %v222 = vsel %vm23, 0.0, %v211
  %v223 = vsel %vm36, %v222, 0.0
  %v224 = vsel %vm37, %v213, 0.0
  %v225 = vsel %vm36, %v215, 0.0
  %v226 = vsel %vm37, %v217, 0.0
  %v227 = vld [vmem:[%s1 + $0x88] sm:$0xff]
  %v228 = vld [vmem:[%s1 + $0x90] sm:$0xff]
  %vm229 = vcmask 64512
  %v230 = vsel %vm229, %v203, 0
  %v232 = vsel %vm229, %v204, 0
  %v234 = vsel %vm229, %v205, 0
  %v236 = vsel %vm229, %v206, 0
  %238 = vmatpush.msra.mxu0 0.0
  %239 = vmatpush.msra.mxu0 0.0
  %240 = vmatpush.msra.mxu0 0.0
  %241 = vmatpush.msra.mxu0 0.0
  %242 = vmatpush.msra.mxu0 0.0
  %243 = vmatpush.msra.mxu0 0.0
  %244 = vmatpush.msra.mxu0 0.0
  %245 = vmatpush.msra.mxu0 0.0
  %246 = vmatpush.msra.mxu0 0.0
  %247 = vmatpush.msra.mxu0 0.0
  %248 = vmatpush.msra.mxu0 0.0
  %249 = vmatpush.msra.mxu0 0.0
  %250 = vmatpush.msra.mxu0 0.0
  %251 = vmatpush.msra.mxu0 0.0
  %252 = vmatpush.msra.mxu0 0.0
  %253 = vmatpush.msra.mxu0 %v228
  %254 = vmatmul.f32.gmra.mxu0 %v230
  %v255 = vpop.f32.mrf.mxu0
  %v256 = vadd.f32 0.0, %v255
  %257 = vmatmul.f32.gmra.mxu0 %v232
  %v258 = vpop.f32.mrf.mxu0
  %v259 = vadd.f32 0.0, %v258
  %260 = vmatmul.f32.gmra.mxu0 %v234
  %v261 = vpop.f32.mrf.mxu0
  %v262 = vadd.f32 0.0, %v261
  %263 = vmatmul.f32.gmra.mxu0 %v236
  %v264 = vpop.f32.mrf.mxu0
  %v265 = vadd.f32 0.0, %v264
  %266 = vdwg.mxu0
  %v268 = vsel %vm229, %v223, 0
  %v271 = vsel %vm229, %v224, 0
  %v274 = vsel %vm229, %v225, 0
  %v277 = vsel %vm229, %v226, 0
  %279 = vmatpush.msra.mxu0 0.0
  %280 = vmatpush.msra.mxu0 0.0
  %281 = vmatpush.msra.mxu0 0.0
  %282 = vmatpush.msra.mxu0 0.0
  %283 = vmatpush.msra.mxu0 0.0
  %284 = vmatpush.msra.mxu0 0.0
  %285 = vmatpush.msra.mxu0 0.0
  %286 = vmatpush.msra.mxu0 0.0
  %287 = vmatpush.msra.mxu0 0.0
  %288 = vmatpush.msra.mxu0 0.0
  %289 = vmatpush.msra.mxu0 0.0
  %290 = vmatpush.msra.mxu0 0.0
  %291 = vmatpush.msra.mxu0 0.0
  %292 = vmatpush.msra.mxu0 0.0
  %293 = vmatpush.msra.mxu0 0.0
  %294 = vmatpush.msra.mxu0 %v227
  %295 = vmatmul.f32.gmra.mxu0 %v268
  %v296 = vpop.f32.mrf.mxu0
  %v297 = vadd.f32 %v256, %v296
  %298 = vmatmul.f32.gmra.mxu0 %v271
  %v299 = vpop.f32.mrf.mxu0
  %v300 = vadd.f32 %v259, %v299
  %301 = vmatmul.f32.gmra.mxu0 %v274
  %v302 = vpop.f32.mrf.mxu0
  %v303 = vadd.f32 %v262, %v302
  %304 = vmatmul.f32.gmra.mxu0 %v277
  %v305 = vpop.f32.mrf.mxu0
  %v306 = vadd.f32 %v265, %v305
  %307 = vdwg.mxu0
  %v308 = vrot.slane %v203, 1
  %v309 = vrot.slane %v204, 1
  %v310 = vsel %vm130, %v308, %v309
  %v311 = vrot.slane %v205, 1
  %v312 = vsel %vm130, %v309, %v311
  %v313 = vrot.slane %v206, 1
  %v314 = vsel %vm130, %v311, %v313
  %v319 = vsel %vm130, %v313, 0.0
  %v320 = vsel %vm143, %v310, 0.0
  %v321 = vsel %vm144, %v312, 0.0
  %v322 = vsel %vm143, %v314, 0.0
  %v323 = vsel %vm144, %v319, 0.0
  %v324 = vld [vmem:[%s1 + $0x98] sm:$0xff]
  %v326 = vsel %vm229, %v320, 0
  %v329 = vsel %vm229, %v321, 0
  %v332 = vsel %vm229, %v322, 0
  %v335 = vsel %vm229, %v323, 0
  %337 = vmatpush.msra.mxu0 0.0
  %338 = vmatpush.msra.mxu0 0.0
  %339 = vmatpush.msra.mxu0 0.0
  %340 = vmatpush.msra.mxu0 0.0
  %341 = vmatpush.msra.mxu0 0.0
  %342 = vmatpush.msra.mxu0 0.0
  %343 = vmatpush.msra.mxu0 0.0
  %344 = vmatpush.msra.mxu0 0.0
  %345 = vmatpush.msra.mxu0 0.0
  %346 = vmatpush.msra.mxu0 0.0
  %347 = vmatpush.msra.mxu0 0.0
  %348 = vmatpush.msra.mxu0 0.0
  %349 = vmatpush.msra.mxu0 0.0
  %350 = vmatpush.msra.mxu0 0.0
  %351 = vmatpush.msra.mxu0 0.0
  %352 = vmatpush.msra.mxu0 %v324
  %353 = vmatmul.f32.gmra.mxu0 %v326
  %v354 = vpop.f32.mrf.mxu0
  %v355 = vadd.f32 0.0, %v354
  %356 = vmatmul.f32.gmra.mxu0 %v329
  %v357 = vpop.f32.mrf.mxu0
  %v358 = vadd.f32 0.0, %v357
  %359 = vmatmul.f32.gmra.mxu0 %v332
  %v360 = vpop.f32.mrf.mxu0
  %v361 = vadd.f32 0.0, %v360
  %362 = vmatmul.f32.gmra.mxu0 %v335
  %v363 = vpop.f32.mrf.mxu0
  %v364 = vadd.f32 0.0, %v363
  %365 = vdwg.mxu0
  %v366 = vadd.f32 %v297, %v355
  %v367 = vadd.f32 %v300, %v358
  %v368 = vadd.f32 %v303, %v361
  %v369 = vadd.f32 %v306, %v364
  %371 = vrot.lane.b32.xlu0 %v198, 120
  %v372 = vpop.permute.xlu0 %371
  %v374 = vadd.f32 %v366, %v372
  %v375 = vadd.f32 %v367, %v372
  %v376 = vadd.f32 %v368, %v372
  %v377 = vadd.f32 %v369, %v372
  %v378 = vmax.f32 %v374, 0.0
  %v379 = vmax.f32 %v375, 0.0
  %v380 = vmax.f32 %v376, 0.0
  %v381 = vmax.f32 %v377, 0.0
  %v386 = vrot.slane %v378, 1
  %v387 = vrot.slane %v379, 1
  %v388 = vsel %vm130, %v386, %v387
  %v389 = vrot.slane %v380, 1
  %v390 = vsel %vm130, %v387, %v389
  %v391 = vrot.slane %v381, 1
  %v392 = vsel %vm130, %v389, %v391
  %v397 = vsel %vm130, %v391, 0.0
  %v398 = vmax.f32 %v378, %v388
  %v399 = vmax.f32 %v379, %v390
  %v400 = vmax.f32 %v380, %v392
  %v401 = vmax.f32 %v381, %v397
  %v403 = vrot.slane %v400, 7
  %v405 = vsel %vm23, %v398, %v403
  %v406 = vld [vmem:[%s1] sm:$0xff]
  %v407 = vld [vmem:[%s1 + $0x8] sm:$0xff]
  %v409 = vrot.slane %v398, 2
  %v411 = vrot.slane %v400, 1
  %v413 = vsel %vm23, %v409, %v411
  %v414 = vld [vmem:[%s1 + $0x10] sm:$0xff]
  %v415 = vld [vmem:[%s1 + $0x18] sm:$0xff]
  %vm416 = vcmask 130048
  %v418 = vsel %vm416, %v413, 0
  %420 = vmatpush.msra.mxu0 0.0
  %421 = vmatpush.msra.mxu0 0.0
  %422 = vmatpush.msra.mxu0 0.0
  %423 = vmatpush.msra.mxu0 0.0
  %424 = vmatpush.msra.mxu0 0.0
  %425 = vmatpush.msra.mxu0 0.0
  %426 = vmatpush.msra.mxu0 0.0
  %427 = vmatpush.msra.mxu0 0.0
  %428 = vmatpush.msra.mxu0 0.0
  %429 = vmatpush.msra.mxu0 0.0
  %430 = vmatpush.msra.mxu0 0.0
  %431 = vmatpush.msra.mxu0 0.0
  %432 = vmatpush.msra.mxu0 0.0
  %433 = vmatpush.msra.mxu0 0.0
  %434 = vmatpush.msra.mxu0 %v415
  %435 = vmatpush.msra.mxu0 %v414
  %436 = vmatmul.f32.gmra.mxu0 %v418
  %v437 = vpop.f32.mrf.mxu0
  %v438 = vadd.f32 0.0, %v437
  %439 = vdwg.mxu0
  %v441 = vsel %vm416, %v405, 0
  %443 = vmatpush.msra.mxu0 0.0
  %444 = vmatpush.msra.mxu0 0.0
  %445 = vmatpush.msra.mxu0 0.0
  %446 = vmatpush.msra.mxu0 0.0
  %447 = vmatpush.msra.mxu0 0.0
  %448 = vmatpush.msra.mxu0 0.0
  %449 = vmatpush.msra.mxu0 0.0
  %450 = vmatpush.msra.mxu0 0.0
  %451 = vmatpush.msra.mxu0 0.0
  %452 = vmatpush.msra.mxu0 0.0
  %453 = vmatpush.msra.mxu0 0.0
  %454 = vmatpush.msra.mxu0 0.0
  %455 = vmatpush.msra.mxu0 0.0
  %456 = vmatpush.msra.mxu0 0.0
  %457 = vmatpush.msra.mxu0 %v407
  %458 = vmatpush.msra.mxu0 %v406
  %459 = vmatmul.f32.gmra.mxu0 %v441
  %v460 = vpop.f32.mrf.mxu0
  %v461 = vadd.f32 %v438, %v460
  %462 = vdwg.mxu0
  %v463 = vrot.slane %v398, 4
  %v465 = vrot.slane %v400, 3
  %v467 = vsel %vm23, %v463, %v465
  %v468 = vld [vmem:[%s1 + $0x20] sm:$0xff]
  %v469 = vld [vmem:[%s1 + $0x28] sm:$0xff]
  %v471 = vsel %vm416, %v467, 0
  %473 = vmatpush.msra.mxu0 0.0
  %474 = vmatpush.msra.mxu0 0.0
  %475 = vmatpush.msra.mxu0 0.0
  %476 = vmatpush.msra.mxu0 0.0
  %477 = vmatpush.msra.mxu0 0.0
  %478 = vmatpush.msra.mxu0 0.0
  %479 = vmatpush.msra.mxu0 0.0
  %480 = vmatpush.msra.mxu0 0.0
  %481 = vmatpush.msra.mxu0 0.0
  %482 = vmatpush.msra.mxu0 0.0
  %483 = vmatpush.msra.mxu0 0.0
  %484 = vmatpush.msra.mxu0 0.0
  %485 = vmatpush.msra.mxu0 0.0
  %486 = vmatpush.msra.mxu0 0.0
  %487 = vmatpush.msra.mxu0 %v469
  %488 = vmatpush.msra.mxu0 %v468
  %489 = vmatmul.f32.gmra.mxu0 %v471
  %v490 = vpop.f32.mrf.mxu0
  %v491 = vadd.f32 0.0, %v490
  %492 = vdwg.mxu0
  %v493 = vadd.f32 %v461, %v491
  %v494 = vrot.slane %v398, 6
  %v496 = vrot.slane %v400, 5
  %v498 = vsel %vm23, %v494, %v496
  %v499 = vld [vmem:[%s1 + $0x30] sm:$0xff]
  %v500 = vld [vmem:[%s1 + $0x38] sm:$0xff]
  %v502 = vsel %vm416, %v498, 0
  %504 = vmatpush.msra.mxu0 0.0
  %505 = vmatpush.msra.mxu0 0.0
  %506 = vmatpush.msra.mxu0 0.0
  %507 = vmatpush.msra.mxu0 0.0
  %508 = vmatpush.msra.mxu0 0.0
  %509 = vmatpush.msra.mxu0 0.0
  %510 = vmatpush.msra.mxu0 0.0
  %511 = vmatpush.msra.mxu0 0.0
  %512 = vmatpush.msra.mxu0 0.0
  %513 = vmatpush.msra.mxu0 0.0
  %514 = vmatpush.msra.mxu0 0.0
  %515 = vmatpush.msra.mxu0 0.0
  %516 = vmatpush.msra.mxu0 0.0
  %517 = vmatpush.msra.mxu0 0.0
  %518 = vmatpush.msra.mxu0 %v500
  %519 = vmatpush.msra.mxu0 %v499
  %520 = vmatmul.f32.gmra.mxu0 %v502
  %v521 = vpop.f32.mrf.mxu0
  %v522 = vadd.f32 0.0, %v521
  %523 = vdwg.mxu0
  %v524 = vadd.f32 %v493, %v522
  %v526 = vrot.slane %v401, 7
  %v528 = vsel %vm23, %v399, %v526
  %v529 = vld [vmem:[%s1 + $0x40] sm:$0xff]
  %v530 = vld [vmem:[%s1 + $0x48] sm:$0xff]
  %v532 = vsel %vm416, %v528, 0
  %534 = vmatpush.msra.mxu0 0.0
  %535 = vmatpush.msra.mxu0 0.0
  %536 = vmatpush.msra.mxu0 0.0
  %537 = vmatpush.msra.mxu0 0.0
  %538 = vmatpush.msra.mxu0 0.0
  %539 = vmatpush.msra.mxu0 0.0
  %540 = vmatpush.msra.mxu0 0.0
  %541 = vmatpush.msra.mxu0 0.0
  %542 = vmatpush.msra.mxu0 0.0
  %543 = vmatpush.msra.mxu0 0.0
  %544 = vmatpush.msra.mxu0 0.0
  %545 = vmatpush.msra.mxu0 0.0
  %546 = vmatpush.msra.mxu0 0.0
  %547 = vmatpush.msra.mxu0 0.0
  %548 = vmatpush.msra.mxu0 %v530
  %549 = vmatpush.msra.mxu0 %v529
  %550 = vmatmul.f32.gmra.mxu0 %v532
  %v551 = vpop.f32.mrf.mxu0
  %v552 = vadd.f32 0.0, %v551
  %553 = vdwg.mxu0
  %v554 = vadd.f32 %v524, %v552
  %v556 = vrot.slane %v399, 2
  %v558 = vrot.slane %v401, 1
  %v560 = vsel %vm23, %v556, %v558
  %v561 = vld [vmem:[%s1 + $0x50] sm:$0xff]
  %v562 = vld [vmem:[%s1 + $0x58] sm:$0xff]
  %v564 = vsel %vm416, %v560, 0
  %566 = vmatpush.msra.mxu0 0.0
  %567 = vmatpush.msra.mxu0 0.0
  %568 = vmatpush.msra.mxu0 0.0
  %569 = vmatpush.msra.mxu0 0.0
  %570 = vmatpush.msra.mxu0 0.0
  %571 = vmatpush.msra.mxu0 0.0
  %572 = vmatpush.msra.mxu0 0.0
  %573 = vmatpush.msra.mxu0 0.0
  %574 = vmatpush.msra.mxu0 0.0
  %575 = vmatpush.msra.mxu0 0.0
  %576 = vmatpush.msra.mxu0 0.0
  %577 = vmatpush.msra.mxu0 0.0
  %578 = vmatpush.msra.mxu0 0.0
  %579 = vmatpush.msra.mxu0 0.0
  %580 = vmatpush.msra.mxu0 %v562
  %581 = vmatpush.msra.mxu0 %v561
  %582 = vmatmul.f32.gmra.mxu0 %v564
  %v583 = vpop.f32.mrf.mxu0
  %v584 = vadd.f32 0.0, %v583
  %585 = vdwg.mxu0
  %v586 = vadd.f32 %v554, %v584
  %v587 = vrot.slane %v399, 4
  %v589 = vrot.slane %v401, 3
  %v591 = vsel %vm23, %v587, %v589
  %v592 = vld [vmem:[%s1 + $0x60] sm:$0xff]
  %v593 = vld [vmem:[%s1 + $0x68] sm:$0xff]
  %v595 = vsel %vm416, %v591, 0
  %597 = vmatpush.msra.mxu0 0.0
  %598 = vmatpush.msra.mxu0 0.0
  %599 = vmatpush.msra.mxu0 0.0
  %600 = vmatpush.msra.mxu0 0.0
  %601 = vmatpush.msra.mxu0 0.0
  %602 = vmatpush.msra.mxu0 0.0
  %603 = vmatpush.msra.mxu0 0.0
  %604 = vmatpush.msra.mxu0 0.0
  %605 = vmatpush.msra.mxu0 0.0
  %606 = vmatpush.msra.mxu0 0.0
  %607 = vmatpush.msra.mxu0 0.0
  %608 = vmatpush.msra.mxu0 0.0
  %609 = vmatpush.msra.mxu0 0.0
  %610 = vmatpush.msra.mxu0 0.0
  %611 = vmatpush.msra.mxu0 %v593
  %612 = vmatpush.msra.mxu0 %v592
  %613 = vmatmul.f32.gmra.mxu0 %v595
  %v614 = vpop.f32.mrf.mxu0
  %v615 = vadd.f32 0.0, %v614
  %616 = vdwg.mxu0
  %v617 = vadd.f32 %v586, %v615
  %v618 = vrot.slane %v399, 6
  %v620 = vrot.slane %v401, 5
  %v622 = vsel %vm23, %v618, %v620
  %v623 = vld [vmem:[%s1 + $0x70] sm:$0xff]
  %v624 = vld [vmem:[%s1 + $0x78] sm:$0xff]
  %v626 = vsel %vm416, %v622, 0
  %628 = vmatpush.msra.mxu0 0.0
  %629 = vmatpush.msra.mxu0 0.0
  %630 = vmatpush.msra.mxu0 0.0
  %631 = vmatpush.msra.mxu0 0.0
  %632 = vmatpush.msra.mxu0 0.0
  %633 = vmatpush.msra.mxu0 0.0
  %634 = vmatpush.msra.mxu0 0.0
  %635 = vmatpush.msra.mxu0 0.0
  %636 = vmatpush.msra.mxu0 0.0
  %637 = vmatpush.msra.mxu0 0.0
  %638 = vmatpush.msra.mxu0 0.0
  %639 = vmatpush.msra.mxu0 0.0
  %640 = vmatpush.msra.mxu0 0.0
  %641 = vmatpush.msra.mxu0 0.0
  %642 = vmatpush.msra.mxu0 %v624
  %643 = vmatpush.msra.mxu0 %v623
  %644 = vmatmul.f32.gmra.mxu0 %v626
  %v645 = vpop.f32.mrf.mxu0
  %v646 = vadd.f32 0.0, %v645
  %647 = vdwg.mxu0
  %v648 = vadd.f32 %v617, %v646
  %v649 = vld [vmem:[%s1 + $0xe0] sm:$0x1]
  %v650 = vperm.slane %v649, 0
  %v651 = vadd.f32 %v648, %v650
  %v652 = vmax.f32 %v651, 0.0
  %v653 = vld [vmem:[%s1 + $0xa0] sm:$0xff]
  %v654 = vld [vmem:[%s1 + $0xa8] sm:$0xff]
  %v655 = vld [vmem:[%s1 + $0xb0] sm:$0xff]
  %v656 = vld [vmem:[%s1 + $0xb8] sm:$0xff]
  %v657 = vld [vmem:[%s1 + $0xc0] sm:$0xff]
  %v658 = vld [vmem:[%s1 + $0xc8] sm:$0xff]
  %v659 = vld [vmem:[%s1 + $0xd0] sm:$0xff]
  %v660 = vld [vmem:[%s1 + $0xd8] sm:$0xff]
  %vm661 = vcmask 523264
  %v663 = vsel %vm661, %v652, 0
  %665 = vmatpush.msra.mxu0 0.0
  %666 = vmatpush.msra.mxu0 0.0
  %667 = vmatpush.msra.mxu0 0.0
  %668 = vmatpush.msra.mxu0 0.0
  %669 = vmatpush.msra.mxu0 0.0
  %670 = vmatpush.msra.mxu0 0.0
  %671 = vmatpush.msra.mxu0 0.0
  %672 = vmatpush.msra.mxu0 0.0
  %673 = vmatpush.msra.mxu0 %v660
  %674 = vmatpush.msra.mxu0 %v659
  %675 = vmatpush.msra.mxu0 %v658
  %676 = vmatpush.msra.mxu0 %v657
  %677 = vmatpush.msra.mxu0 %v656
  %678 = vmatpush.msra.mxu0 %v655
  %679 = vmatpush.msra.mxu0 %v654
  %680 = vmatpush.msra.mxu0 %v653
  %681 = vmatmul.f32.gmra.mxu0 %v663
  %v682 = vpop.f32.mrf.mxu0
  %v683 = vadd.f32 0.0, %v682
  %684 = vdwg.mxu0
  %685 = vrot.lane.b32.xlu0 %v198, 72
  %v686 = vpop.permute.xlu0 %685
  %v688 = vadd.f32 %v683, %v686
  %v689 = vld [vmem:[%s1 + $0xe1] sm:$0x1]
  %691 = vset.pattern.permute.xlu0 0
  %692 = vperm.xlu0 %691, %v688
  %v693 = vpop.permute.xlu0 %692
  %v695 = vperm.slane %v689, 0
  %v696 = vmul.f32 %v693, %v695
  %698 = vrot.lane.b32.xlu0 %v696, 1
  %v699 = vpop.permute.xlu0 %698
  %v701 = vadd.f32 %v683, %v699
  %702 = vrot.lane.b32.xlu0 %v198, 105
  %v703 = vpop.permute.xlu0 %702
  %v705 = vadd.f32 %v701, %v703
  %v706 = vmax.f32 %v705, 0.0
  %v707 = vld [vmem:[%s1 + $0xe2] sm:$0x1]
  %v708 = vperm.slane %v707, 0
  %710 = vrot.lane.b32.xlu0 %v708, 1
  %v711 = vpop.permute.xlu0 %710
  %v713 = vmul.f32 %v706, %v711
  %715 = vrot.lane.b32.xlu0 %v713, 127
  %v716 = vpop.permute.xlu0 %715
  %vm718 = vcmask 254976
  %v719 = vsel %vm718, %v716, 0.0
  %720 = vadd.xlane.f32.xlu0 %v719
  %v721 = vpop.xlane.xlu0 %720
  %v722 = vadd.f32 %v721, %v198
  %724 = vrot.lane.b32.xlu0 %v722, 71
  %v725 = vpop.permute.xlu0 %724
  %727 = vrot.lane.b32.xlu0 %v688, 1
  %v728 = vpop.permute.xlu0 %727
  %vm730 = vcmask 7168
  %v731 = vsel %vm730, %v725, %v728
  %vm732 = vcmask 9216
  %733 = vst.msk [vmem:[%s2] sm:$0x3] %vm732, %v731
  // Predicated region
  $region10: #{forward.1} parent=0 // pred_check
    _
  $region11: #{forward.1} parent=0 // pred_check_branch
    %735 = sbr.rel (0) target = $region13
  $region12: #{forward.1} parent=0 // pred_region
    _
  $region13: #{forward.1} parent=0 // pred_fallthru
    _
  // Predicated region
  $region14: #{forward.1} parent=0 // pred_check
    _
  $region15: #{forward.1} parent=0 // pred_check_branch
    %737 = sbr.rel (0) target = $region17
  $region16: #{forward.1} parent=0 // pred_region
    _
  $region17: #{forward.1} parent=0 // pred_fallthru
    _

</llo_original>
